<compile_context>
chip_gen: v7x
topology: tpu7x:2x2x1
jax: 0.10.0
libtpu: 0.0.40
codegen_flags: <defaults>
</compile_context>

<pallas_src>
import functools

import jax
import jax.numpy as jnp
from jax.experimental import pallas as pl
from jax.experimental.pallas import tpu as pltpu


# ----------------------------- Pallas kernel ------------------------------- #

def _adain_kernel(x_ref, w_ref, b_ref, o_ref, *, eps):
    """Fused instance-norm + affine for a (rows, H*W) tile.

    x_ref: (rows, HW) f32   -- one row per (b, c) instance
    w_ref: (rows, 1)  f32   -- AdaIN gamma (externally assigned weight)
    b_ref: (rows, 1)  f32   -- AdaIN beta  (externally assigned bias)
    """
    x = x_ref[...]                                        # (rows, HW)
    mean = jnp.mean(x, axis=-1, keepdims=True)            # per-instance spatial mean
    xc = x - mean
    var = jnp.mean(xc * xc, axis=-1, keepdims=True)       # biased var (matches training=True)
    inv = jax.lax.rsqrt(var + eps)                        # EUP rsqrt
    o_ref[...] = (xc * (inv * w_ref[...]) + b_ref[...]).astype(o_ref.dtype)


# ------------------------------- Wrapper ------------------------------------ #

@functools.partial(jax.jit, static_argnames=("eps",))
def adaptive_instance_norm_2d(x, weight, bias, *, eps=1e-5):
    """x: (B, C, H, W); weight/bias: (B*C,) — returns (B, C, H, W)."""
    B, C, H, W = x.shape
    BC, HW = B * C, H * W

    x2 = x.reshape(BC, HW).astype(jnp.float32)
    w2 = weight.reshape(BC, 1).astype(jnp.float32)
    b2 = bias.reshape(BC, 1).astype(jnp.float32)

    # Full reduction axis (HW) per block; tile rows by 8 (sublane count) when
    # divisible so larger BC shards across cores, else take the full dim.
    row_block = 8 if (BC % 8 == 0) else BC
    grid = (BC // row_block,)

    cost = pl.CostEstimate(
        flops=6 * BC * HW,
        transcendentals=BC,
        bytes_accessed=(2 * BC * HW + 4 * BC) * 4,
    )

    out2 = pl.pallas_call(
        functools.partial(_adain_kernel, eps=eps),
        out_shape=jax.ShapeDtypeStruct((BC, HW), jnp.float32),
        grid=grid,
        in_specs=[
            pl.BlockSpec((row_block, HW), lambda i: (i, 0)),
            pl.BlockSpec((row_block, 1), lambda i: (i, 0)),
            pl.BlockSpec((row_block, 1), lambda i: (i, 0)),
        ],
        out_specs=pl.BlockSpec((row_block, HW), lambda i: (i, 0)),
        compiler_params=pltpu.CompilerParams(
            dimension_semantics=("parallel",)),
        cost_estimate=cost,
    )(x2, w2, b2)

    return out2.reshape(B, C, H, W).astype(x.dtype)


# --------------------------- Pure-JAX reference ------------------------------ #

def _adain_ref(x, weight, bias, eps=1e-5):
    B, C, H, W = x.shape
    xr = x.reshape(B * C, H * W).astype(jnp.float32)
    mean = xr.mean(axis=-1, keepdims=True)
    var = ((xr - mean) ** 2).mean(axis=-1, keepdims=True)
    out = (xr - mean) / jnp.sqrt(var + eps)
    out = out * weight.reshape(-1, 1) + bias.reshape(-1, 1)
    return out.reshape(B, C, H, W)


# --------------------------------- Main -------------------------------------- #

if __name__ == "__main__":
    key = jax.random.PRNGKey(0)
    k_x, k_w, k_b = jax.random.split(key, 3)

    B, C, H, W = 2, 4, 16, 16
    x = jax.random.normal(k_x, (B, C, H, W), dtype=jnp.float32)
    # AdaIN weight/bias are assigned externally (e.g. from an MLP) with shape (B*C,)
    weight = jax.random.uniform(k_w, (B * C,), jnp.float32, 0.5, 1.5)
    bias = jax.random.normal(k_b, (B * C,), dtype=jnp.float32) * 0.1

    out = adaptive_instance_norm_2d(x, weight, bias, eps=1e-5)
    out = jax.block_until_ready(out)

    ref = _adain_ref(x, weight, bias, eps=1e-5)
    assert out.shape == (B, C, H, W), out.shape
    assert jnp.allclose(out, ref, atol=1e-5, rtol=1e-5), float(
        jnp.max(jnp.abs(out - ref)))
    print("KERNEL_OK")
</pallas_src>

<mosaic_0001>
module attributes {stable_mosaic.version = 11 : i64} {
  func.func @_adain_kernel(%arg0: i32, %arg1: memref<8x256xf32, #tpu.memory_space<vmem>>, %arg2: memref<8x1xf32, #tpu.memory_space<vmem>>, %arg3: memref<8x1xf32, #tpu.memory_space<vmem>>, %arg4: memref<8x256xf32, #tpu.memory_space<vmem>>) attributes {dimension_semantics = [#tpu.dimension_semantics<parallel>], iteration_bounds = array<i64: 1>, scalar_prefetch = 0 : i64, scratch_operands = 0 : i64, tpu.core_type = #tpu.core_type<tc>, window_params = [{transform_indices = @transform_0, window_bounds = array<i64: 8, 256>}, {transform_indices = @transform_1, window_bounds = array<i64: 8, 1>}, {transform_indices = @transform_2, window_bounds = array<i64: 8, 1>}, {transform_indices = @transform_3, window_bounds = array<i64: 8, 256>}]} {
    %c0 = arith.constant 0 : index
    %c0_0 = arith.constant 0 : index
    %0 = vector.load %arg1[%c0, %c0_0] : memref<8x256xf32, #tpu.memory_space<vmem>>, vector<8x256xf32>
    %cst = arith.constant dense<0.000000e+00> : vector<8xf32>
    %1 = vector.multi_reduction <add>, %0, %cst [1] : vector<8x256xf32> to vector<8xf32>
    %2 = vector.shape_cast %1 : vector<8xf32> to vector<8x1xf32>
    %cst_1 = arith.constant 2.560000e+02 : f32
    %3 = vector.broadcast %cst_1 : f32 to vector<8x1xf32>
    %4 = arith.divf %2, %3 : vector<8x1xf32>
    %5 = vector.broadcast %4 : vector<8x1xf32> to vector<8x256xf32>
    %6 = arith.subf %0, %5 : vector<8x256xf32>
    %7 = arith.mulf %6, %6 : vector<8x256xf32>
    %cst_2 = arith.constant dense<0.000000e+00> : vector<8xf32>
    %8 = vector.multi_reduction <add>, %7, %cst_2 [1] : vector<8x256xf32> to vector<8xf32>
    %9 = vector.shape_cast %8 : vector<8xf32> to vector<8x1xf32>
    %cst_3 = arith.constant 2.560000e+02 : f32
    %10 = vector.broadcast %cst_3 : f32 to vector<8x1xf32>
    %11 = arith.divf %9, %10 : vector<8x1xf32>
    %cst_4 = arith.constant 9.99999974E-6 : f32
    %12 = vector.broadcast %cst_4 : f32 to vector<8x1xf32>
    %13 = arith.addf %11, %12 : vector<8x1xf32>
    %14 = math.rsqrt %13 : vector<8x1xf32>
    %c0_5 = arith.constant 0 : index
    %c0_6 = arith.constant 0 : index
    %15 = vector.load %arg2[%c0_5, %c0_6] : memref<8x1xf32, #tpu.memory_space<vmem>>, vector<8x1xf32>
    %16 = arith.mulf %14, %15 : vector<8x1xf32>
    %17 = vector.broadcast %16 : vector<8x1xf32> to vector<8x256xf32>
    %18 = arith.mulf %6, %17 : vector<8x256xf32>
    %c0_7 = arith.constant 0 : index
    %c0_8 = arith.constant 0 : index
    %19 = vector.load %arg3[%c0_7, %c0_8] : memref<8x1xf32, #tpu.memory_space<vmem>>, vector<8x1xf32>
    %20 = vector.broadcast %19 : vector<8x1xf32> to vector<8x256xf32>
    %21 = arith.addf %18, %20 : vector<8x256xf32>
    %c0_9 = arith.constant 0 : index
    %c0_10 = arith.constant 0 : index
    %22 = vector.load %arg4[%c0_9, %c0_10] : memref<8x256xf32, #tpu.memory_space<vmem>>, vector<8x256xf32>
    tpu.vector_store %arg4[%c0_9, %c0_10], %21 {strides = array<i32>} : memref<8x256xf32, #tpu.memory_space<vmem>>, vector<8x256xf32>,
    return
  }
  func.func @transform_0(%arg0: i32) -> (i32, i32) {
    %c0_i32 = arith.constant 0 : i32
    %c0_i32_0 = arith.constant 0 : i32
    return %arg0, %c0_i32 : i32, i32
  }
  func.func @transform_1(%arg0: i32) -> (i32, i32) {
    %c0_i32 = arith.constant 0 : i32
    %c0_i32_0 = arith.constant 0 : i32
    return %arg0, %c0_i32 : i32, i32
  }
  func.func @transform_2(%arg0: i32) -> (i32, i32) {
    %c0_i32 = arith.constant 0 : i32
    %c0_i32_0 = arith.constant 0 : i32
    return %arg0, %c0_i32 : i32, i32
  }
  func.func @transform_3(%arg0: i32) -> (i32, i32) {
    %c0_i32 = arith.constant 0 : i32
    %c0_i32_0 = arith.constant 0 : i32
    return %arg0, %c0_i32 : i32, i32
  }
}

</mosaic_0001>

<llo_original>
// kernel: adaptive_instance_norm_2d.1
$region0: #{adaptive_instance_norm_2d.1}
  #allocation0 [shape = 'u32[]', space=smem, size = 0x4, offset = 0x4, fixed_abs, tag = 'smem constant byte address 0x4 - core index']
  #allocation1 [shape = 'u32[144,128]{1,0:T(1,128)}', space=vmem, size = 0x12000, scoped, tag = 'internal scratch']
  %s0 = inlined_call_operand.vmem [shape: f32[8,256], index: 0, kind: input, shape index: {}]
  %s1 = inlined_call_operand.vmem [shape: f32[8,1], index: 1, kind: input, shape index: {}]
  %s2 = inlined_call_operand.vmem [shape: f32[8,1], index: 2, kind: input, shape index: {}]
  %s3 = inlined_call_operand.vmem [shape: f32[8,256], index: 3, kind: output, shape index: {}]
  %s4 = sld [smem:[#allocation0]]
  $region22: #{adaptive_instance_norm_2d.1} parent=0
    _
  %s6 = ssub.s32 1, %s4
  %s7 = scalar_select 0, %s6, %s4
  // Predicated region
  $region2: #{adaptive_instance_norm_2d.1} parent=0 // pred_check
    _
  $region3: #{adaptive_instance_norm_2d.1} parent=0 // pred_check_branch
    %9 = sbr.rel (0) target = $region5
  $region4: #{adaptive_instance_norm_2d.1} parent=0 // pred_region
    _
  $region5: #{adaptive_instance_norm_2d.1} parent=0 // pred_fallthru
    _
  // Predicated region
  $region6: #{adaptive_instance_norm_2d.1} parent=0 // pred_check
    _
  $region7: #{adaptive_instance_norm_2d.1} parent=0 // pred_check_branch
    %11 = sbr.rel (0) target = $region9
  $region8: #{adaptive_instance_norm_2d.1} parent=0 // pred_region
    _
  $region9: #{adaptive_instance_norm_2d.1} parent=0 // pred_fallthru
    _
  // Predicated region
  $region10: #{adaptive_instance_norm_2d.1} parent=0 // pred_check
    _
  $region11: #{adaptive_instance_norm_2d.1} parent=0 // pred_check_branch
    %13 = sbr.rel (0) target = $region13
  $region12: #{adaptive_instance_norm_2d.1} parent=0 // pred_region
    _
  $region13: #{adaptive_instance_norm_2d.1} parent=0 // pred_fallthru
    _
  %v14 = vld [vmem:[%s0] sm:$0xff]
  %v15 = vld [vmem:[%s0 + $0x8] sm:$0xff]
  %v16 = vadd.f32 %v14, %v15
  %17 = vadd.xlane.f32.xlu0 %v16
  %v18 = vpop.xlane.xlu0 %17
  %v19 = vrcp.pop 256.0
  %v20 = vmul.f32 %v18, %v19
  %v21 = vsub.f32 %v14, %v20
  %v22 = vsub.f32 %v15, %v20
  %v23 = vmul.f32 %v21, %v21
  %v24 = vmul.f32 %v22, %v22
  %v25 = vadd.f32 %v23, %v24
  %26 = vadd.xlane.f32.xlu0 %v25
  %v27 = vpop.xlane.xlu0 %26
  %v28 = vmul.f32 %v27, %v19
  %v29 = vadd.f32 %v28, 1e-05
  %v30 = vrsqrt.pop %v29
  %v31 = vld [vmem:[%s1] sm:$0xff]
  %v32 = vmul.f32 %v30, %v31
  %34 = vset.pattern.permute.xlu0 0
  %35 = vperm.xlu0 %34, %v32
  %v36 = vpop.permute.xlu0 %35
  %v38 = vmul.f32 %v21, %v36
  %v39 = vmul.f32 %v22, %v36
  %v40 = vld [vmem:[%s2] sm:$0xff]
  %42 = vset.pattern.permute.xlu0 0
  %43 = vperm.xlu0 %42, %v40
  %v44 = vpop.permute.xlu0 %43
  %v46 = vadd.f32 %v38, %v44
  %v47 = vadd.f32 %v39, %v44
  %48 = vst [vmem:[%s3] sm:$0xff] %v46
  %49 = vst [vmem:[%s3 + $0x8] sm:$0xff] %v47
  // Predicated region
  $region14: #{adaptive_instance_norm_2d.1} parent=0 // pred_check
    _
  $region15: #{adaptive_instance_norm_2d.1} parent=0 // pred_check_branch
    %51 = sbr.rel (0) target = $region17
  $region16: #{adaptive_instance_norm_2d.1} parent=0 // pred_region
    _
  $region17: #{adaptive_instance_norm_2d.1} parent=0 // pred_fallthru
    _
  // Predicated region
  $region18: #{adaptive_instance_norm_2d.1} parent=0 // pred_check
    _
  $region19: #{adaptive_instance_norm_2d.1} parent=0 // pred_check_branch
    %53 = sbr.rel (0) target = $region21
  $region20: #{adaptive_instance_norm_2d.1} parent=0 // pred_region
    _
  $region21: #{adaptive_instance_norm_2d.1} parent=0 // pred_fallthru
    _

</llo_original>
